<compile_context>
chip_gen: v7x
topology: tpu7x:2x2x1
jax: 0.10.0
libtpu: 0.0.40
codegen_flags: <defaults>
</compile_context>

<pallas_src>
import functools

import jax
import jax.numpy as jnp
from jax.experimental import pallas as pl
from jax.experimental.pallas import tpu as pltpu


def _make_kernel(kh, kw, Wp, S, icg):
    """One (group, batch) block: packed-K conv + BN shift + PReLU.

    x_ref:    (icg, L)   flattened padded image (one n, one group), L >= max(off)+S
    w_ref:    (ocg, K)   BN-scale-folded conv weights, K = kh*kw*icg, (ki,kj,c) order
    sa_ref:   (ocg, 2)   col 0 = BN shift (beta - mean*scale), col 1 = PReLU alpha
    o_ref:    (ocg, S)   S = OHd*Wp dense (stride-1) conv outputs, lane-dense
    taps_ref: (K, S)     VMEM scratch holding all kh*kw shifted taps (omitted for 1x1)
    """
    offs = [ki * Wp + kj for ki in range(kh) for kj in range(kw)]

    def epilogue(z, sa_ref, o_ref):
        z = z + sa_ref[:, 0:1]                                   # BN shift
        o_ref[...] = jnp.where(z > 0.0, z, sa_ref[:, 1:2] * z).astype(o_ref.dtype)

    if len(offs) == 1:
        # 1x1 conv: no tap shifting needed, contract straight off the image.
        def kernel(x_ref, w_ref, sa_ref, o_ref):
            z = jnp.dot(w_ref[...], x_ref[:, pl.ds(offs[0], S)],
                        preferred_element_type=jnp.float32)
            epilogue(z, sa_ref, o_ref)
        return kernel

    def kernel(x_ref, w_ref, sa_ref, o_ref, taps_ref):
        # Build the packed-K operand once (each unaligned tap slice is copied
        # exactly once), then issue a single MXU contraction with K=kh*kw*icg.
        for t, off in enumerate(offs):
            taps_ref[t * icg:(t + 1) * icg, :] = x_ref[:, pl.ds(off, S)]
        z = jnp.dot(w_ref[...], taps_ref[...], preferred_element_type=jnp.float32)
        epilogue(z, sa_ref, o_ref)

    return kernel


@functools.partial(
    jax.jit, static_argnames=("kernel", "stride", "padding", "groups", "compute_dtype"))
def conv_block_forward(x_nchw, params, kernel=(1, 1), stride=(1, 1),
                       padding=(0, 0), groups=1, compute_dtype=jnp.float32):
    """Matches PyTorch Conv_block.forward (BatchNorm in eval mode)."""
    w = params["conv_w"]            # (OC, IC // groups, KH, KW) -- PyTorch layout
    gamma, beta = params["bn_gamma"], params["bn_beta"]
    mean, var = params["bn_mean"], params["bn_var"]
    alpha = params["prelu_alpha"]
    eps = 1e-3

    kh, kw = kernel
    sh, sw = stride
    ph, pw = padding
    N, IC, H, W = x_nchw.shape
    OC = w.shape[0]
    G = groups
    icg = IC // G
    ocg = OC // G

    Hp, Wp = H + 2 * ph, W + 2 * pw
    OHd = Hp - kh + 1                  # dense (stride-1) output rows the kernel produces
    OH = (Hp - kh) // sh + 1
    OW = (Wp - kw) // sw + 1
    S = OHd * Wp                       # flattened dense output length per channel
    K = kh * kw * icg

    # One extra zero row at the bottom keeps every tap slice (largest offset
    # (kh-1)*Wp + kw-1) in bounds of the flattened image: fixes the previous
    # OOB trace error with a single pad pass.  The extra zeros only feed
    # garbage positions that the wrapper crop discards.
    extra_rows = 1 if kw > 1 else 0
    L = (Hp + extra_rows) * Wp

    # ---- wrapper-side prep (single input pad; reshapes are layout-free) ----
    xp = jnp.pad(x_nchw.astype(compute_dtype),
                 ((0, 0), (0, 0), (ph, ph + extra_rows), (pw, pw)))
    xf = xp.reshape(N, G, icg, L)

    scale = gamma / jnp.sqrt(var + eps)            # BN scale folded into weights
    shift = beta - mean * scale
    wmat = w.astype(jnp.float32).reshape(G, ocg, icg, kh, kw)
    wmat = jnp.transpose(wmat, (0, 1, 3, 4, 2)).reshape(G, ocg, K)   # (ki,kj,c) order
    wmat = (wmat * scale.reshape(G, ocg, 1)).astype(compute_dtype)
    # Merge shift + PReLU alpha into a single tiny (G, ocg, 2) f32 input.
    sa = jnp.stack([shift.reshape(G, ocg), alpha.reshape(G, ocg)], axis=-1)
    sa = sa.astype(jnp.float32)

    kern = _make_kernel(kh, kw, Wp, S, icg)
    scratch = () if kh * kw == 1 else (pltpu.VMEM((K, S), compute_dtype),)

    itemsize = jnp.dtype(compute_dtype).itemsize
    cost = pl.CostEstimate(
        flops=2 * N * G * ocg * K * S,
        transcendentals=0,
        bytes_accessed=(N * G * icg * L * itemsize
                        + G * ocg * K * itemsize
                        + G * ocg * 2 * 4
                        + N * G * ocg * S * 4))

    out_full = pl.pallas_call(
        kern,
        out_shape=jax.ShapeDtypeStruct((N, G, ocg, S), jnp.float32),
        grid_spec=pltpu.PrefetchScalarGridSpec(
            num_scalar_prefetch=0,
            # g outermost / n innermost: the weight and shift/alpha blocks are
            # invariant along the inner axis, so they stay VMEM-resident.
            grid=(G, N),
            in_specs=[
                pl.BlockSpec((None, None, icg, L), lambda g, n: (n, g, 0, 0)),
                pl.BlockSpec((None, ocg, K), lambda g, n: (g, 0, 0)),
                pl.BlockSpec((None, ocg, 2), lambda g, n: (g, 0, 0)),
            ],
            out_specs=pl.BlockSpec((None, None, ocg, S), lambda g, n: (n, g, 0, 0)),
            scratch_shapes=scratch,
        ),
        compiler_params=pltpu.CompilerParams(
            dimension_semantics=("parallel", "parallel"),
            # Cap, not an allocation; harmless at demo shapes. Tune per chip
            # generation (>=64 MiB useful on v5e/v6e for whole-image blocks).
            vmem_limit_bytes=64 * 1024 * 1024),
        cost_estimate=cost,
    )(xf, wmat, sa)

    # Keep only the valid / strided output positions; result is already NCHW.
    y = out_full.reshape(N, G, ocg, OHd, Wp)
    y = y[:, :, :, 0:(OH - 1) * sh + 1:sh, 0:(OW - 1) * sw + 1:sw]
    return y.reshape(N, OC, OH, OW)


def _reference_forward(x_nchw, params, kernel, stride, padding, groups):
    """Pure-JAX reference using lax.conv, for correctness check."""
    w = params["conv_w"]
    eps = 1e-3
    y = jax.lax.conv_general_dilated(
        x_nchw.astype(jnp.float32), w.astype(jnp.float32),
        window_strides=stride,
        padding=[(padding[0], padding[0]), (padding[1], padding[1])],
        dimension_numbers=("NCHW", "OIHW", "NCHW"),
        feature_group_count=groups)
    scale = (params["bn_gamma"] / jnp.sqrt(params["bn_var"] + eps))[None, :, None, None]
    shift = (params["bn_beta"] - params["bn_mean"] *
             params["bn_gamma"] / jnp.sqrt(params["bn_var"] + eps))[None, :, None, None]
    y = y * scale + shift
    a = params["prelu_alpha"][None, :, None, None]
    return jnp.where(y > 0, y, a * y)


if __name__ == "__main__":
    key = jax.random.PRNGKey(0)

    def make_inputs(k, N, IC, OC, KH, KW, H, W, groups):
        k_x, k_w, k_g, k_b, k_m, k_v, _ = jax.random.split(k, 7)
        x = jax.random.normal(k_x, (N, IC, H, W), dtype=jnp.float32)
        params = {
            "conv_w": 0.1 * jax.random.normal(k_w, (OC, IC // groups, KH, KW), jnp.float32),
            "bn_gamma": 1.0 + 0.1 * jax.random.normal(k_g, (OC,), jnp.float32),
            "bn_beta": 0.1 * jax.random.normal(k_b, (OC,), jnp.float32),
            "bn_mean": 0.1 * jax.random.normal(k_m, (OC,), jnp.float32),
            "bn_var": 1.0 + 0.1 * jnp.abs(jax.random.normal(k_v, (OC,), jnp.float32)),
            "prelu_alpha": jnp.full((OC,), 0.25, jnp.float32),  # PyTorch PReLU default
        }
        return x, params

    # (name, (N,IC,OC,H,W), kernel, stride, padding, groups, compute_dtype, tol)
    cases = [
        ("3x3_s1_f32",  (2, 4, 8, 16, 16), (3, 3), (1, 1), (1, 1), 1, jnp.float32, 1e-4),
        ("3x3_s1_bf16", (2, 4, 8, 16, 16), (3, 3), (1, 1), (1, 1), 1, jnp.bfloat16, 3e-2),
        ("3x3_s2_g2",   (2, 4, 8, 16, 16), (3, 3), (2, 2), (1, 1), 2, jnp.float32, 1e-4),
        ("1x1_s1_p0",   (2, 4, 8, 16, 16), (1, 1), (1, 1), (0, 0), 1, jnp.float32, 1e-4),
    ]

    keys = jax.random.split(key, len(cases))
    for (name, dims, kern, stride, pad, groups, cdt, tol), ck in zip(cases, keys):
        N, IC, OC, H, W = dims
        x, params = make_inputs(ck, N, IC, OC, kern[0], kern[1], H, W, groups)

        y = conv_block_forward(x, params, kern, stride, pad, groups, compute_dtype=cdt)
        y = jax.block_until_ready(y)

        y_ref = _reference_forward(x, params, kern, stride, pad, groups)
        OH = (H + 2 * pad[0] - kern[0]) // stride[0] + 1
        OW = (W + 2 * pad[1] - kern[1]) // stride[1] + 1
        assert y.shape == (N, OC, OH, OW), (name, y.shape)
        assert jnp.allclose(y.astype(jnp.float32), y_ref, rtol=tol, atol=tol), name

    print("KERNEL_OK")
</pallas_src>

<mosaic_0001>
module attributes {stable_mosaic.version = 11 : i64} {
  func.func @kernel(%arg0: i32, %arg1: i32, %arg2: memref<1x1x4x342xf32, #tpu.memory_space<vmem>>, %arg3: memref<1x8x36xf32, #tpu.memory_space<vmem>>, %arg4: memref<1x8x2xf32, #tpu.memory_space<vmem>>, %arg5: memref<1x1x8x288xf32, #tpu.memory_space<vmem>>, %arg6: memref<36x288xf32, #tpu.memory_space<vmem>>) attributes {dimension_semantics = [#tpu.dimension_semantics<parallel>, #tpu.dimension_semantics<parallel>], iteration_bounds = array<i64: 1, 2>, scalar_prefetch = 0 : i64, scratch_operands = 1 : i64, tpu.core_type = #tpu.core_type<tc>, window_params = [{transform_indices = @transform_0, window_bounds = array<i64: 1, 1, 4, 342>}, {transform_indices = @transform_1, window_bounds = array<i64: 1, 8, 36>}, {transform_indices = @transform_2, window_bounds = array<i64: 1, 8, 2>}, {transform_indices = @transform_3, window_bounds = array<i64: 1, 1, 8, 288>}]} {
    %c0 = arith.constant 0 : index
    %c0_0 = arith.constant 0 : index
    %c0_1 = arith.constant 0 : index
    %c0_2 = arith.constant 0 : index
    %0 = vector.load %arg2[%c0, %c0_0, %c0_1, %c0_2] : memref<1x1x4x342xf32, #tpu.memory_space<vmem>>, vector<1x1x4x288xf32>
    %1 = vector.shape_cast %0 : vector<1x1x4x288xf32> to vector<4x288xf32>
    %c0_3 = arith.constant 0 : index
    %c0_4 = arith.constant 0 : index
    %2 = vector.load %arg6[%c0_3, %c0_4] : memref<36x288xf32, #tpu.memory_space<vmem>>, vector<4x288xf32>
    tpu.vector_store %arg6[%c0_3, %c0_4], %1 {strides = array<i32>} : memref<36x288xf32, #tpu.memory_space<vmem>>, vector<4x288xf32>,
    %c0_5 = arith.constant 0 : index
    %c0_6 = arith.constant 0 : index
    %c0_7 = arith.constant 0 : index
    %c1 = arith.constant 1 : index
    %3 = vector.load %arg2[%c0_5, %c0_6, %c0_7, %c1] : memref<1x1x4x342xf32, #tpu.memory_space<vmem>>, vector<1x1x4x288xf32>
    %4 = vector.shape_cast %3 : vector<1x1x4x288xf32> to vector<4x288xf32>
    %c4 = arith.constant 4 : index
    %c0_8 = arith.constant 0 : index
    %5 = vector.load %arg6[%c4, %c0_8] : memref<36x288xf32, #tpu.memory_space<vmem>>, vector<4x288xf32>
    tpu.vector_store %arg6[%c4, %c0_8], %4 {strides = array<i32>} : memref<36x288xf32, #tpu.memory_space<vmem>>, vector<4x288xf32>,
    %c0_9 = arith.constant 0 : index
    %c0_10 = arith.constant 0 : index
    %c0_11 = arith.constant 0 : index
    %c2 = arith.constant 2 : index
    %6 = vector.load %arg2[%c0_9, %c0_10, %c0_11, %c2] : memref<1x1x4x342xf32, #tpu.memory_space<vmem>>, vector<1x1x4x288xf32>
    %7 = vector.shape_cast %6 : vector<1x1x4x288xf32> to vector<4x288xf32>
    %c8 = arith.constant 8 : index
    %c0_12 = arith.constant 0 : index
    %8 = vector.load %arg6[%c8, %c0_12] : memref<36x288xf32, #tpu.memory_space<vmem>>, vector<4x288xf32>
    tpu.vector_store %arg6[%c8, %c0_12], %7 {strides = array<i32>} : memref<36x288xf32, #tpu.memory_space<vmem>>, vector<4x288xf32>,
    %c0_13 = arith.constant 0 : index
    %c0_14 = arith.constant 0 : index
    %c0_15 = arith.constant 0 : index
    %c18 = arith.constant 18 : index
    %9 = vector.load %arg2[%c0_13, %c0_14, %c0_15, %c18] : memref<1x1x4x342xf32, #tpu.memory_space<vmem>>, vector<1x1x4x288xf32>
    %10 = vector.shape_cast %9 : vector<1x1x4x288xf32> to vector<4x288xf32>
    %c12 = arith.constant 12 : index
    %c0_16 = arith.constant 0 : index
    %11 = vector.load %arg6[%c12, %c0_16] : memref<36x288xf32, #tpu.memory_space<vmem>>, vector<4x288xf32>
    tpu.vector_store %arg6[%c12, %c0_16], %10 {strides = array<i32>} : memref<36x288xf32, #tpu.memory_space<vmem>>, vector<4x288xf32>,
    %c0_17 = arith.constant 0 : index
    %c0_18 = arith.constant 0 : index
    %c0_19 = arith.constant 0 : index
    %c19 = arith.constant 19 : index
    %12 = vector.load %arg2[%c0_17, %c0_18, %c0_19, %c19] : memref<1x1x4x342xf32, #tpu.memory_space<vmem>>, vector<1x1x4x288xf32>
    %13 = vector.shape_cast %12 : vector<1x1x4x288xf32> to vector<4x288xf32>
    %c16 = arith.constant 16 : index
    %c0_20 = arith.constant 0 : index
    %14 = vector.load %arg6[%c16, %c0_20] : memref<36x288xf32, #tpu.memory_space<vmem>>, vector<4x288xf32>
    tpu.vector_store %arg6[%c16, %c0_20], %13 {strides = array<i32>} : memref<36x288xf32, #tpu.memory_space<vmem>>, vector<4x288xf32>,
    %c0_21 = arith.constant 0 : index
    %c0_22 = arith.constant 0 : index
    %c0_23 = arith.constant 0 : index
    %c20 = arith.constant 20 : index
    %15 = vector.load %arg2[%c0_21, %c0_22, %c0_23, %c20] : memref<1x1x4x342xf32, #tpu.memory_space<vmem>>, vector<1x1x4x288xf32>
    %16 = vector.shape_cast %15 : vector<1x1x4x288xf32> to vector<4x288xf32>
    %c20_24 = arith.constant 20 : index
    %c0_25 = arith.constant 0 : index
    %17 = vector.load %arg6[%c20_24, %c0_25] : memref<36x288xf32, #tpu.memory_space<vmem>>, vector<4x288xf32>
    tpu.vector_store %arg6[%c20_24, %c0_25], %16 {strides = array<i32>} : memref<36x288xf32, #tpu.memory_space<vmem>>, vector<4x288xf32>,
    %c0_26 = arith.constant 0 : index
    %c0_27 = arith.constant 0 : index
    %c0_28 = arith.constant 0 : index
    %c36 = arith.constant 36 : index
    %18 = vector.load %arg2[%c0_26, %c0_27, %c0_28, %c36] : memref<1x1x4x342xf32, #tpu.memory_space<vmem>>, vector<1x1x4x288xf32>
    %19 = vector.shape_cast %18 : vector<1x1x4x288xf32> to vector<4x288xf32>
    %c24 = arith.constant 24 : index
    %c0_29 = arith.constant 0 : index
    %20 = vector.load %arg6[%c24, %c0_29] : memref<36x288xf32, #tpu.memory_space<vmem>>, vector<4x288xf32>
    tpu.vector_store %arg6[%c24, %c0_29], %19 {strides = array<i32>} : memref<36x288xf32, #tpu.memory_space<vmem>>, vector<4x288xf32>,
    %c0_30 = arith.constant 0 : index
    %c0_31 = arith.constant 0 : index
    %c0_32 = arith.constant 0 : index
    %c37 = arith.constant 37 : index
    %21 = vector.load %arg2[%c0_30, %c0_31, %c0_32, %c37] : memref<1x1x4x342xf32, #tpu.memory_space<vmem>>, vector<1x1x4x288xf32>
    %22 = vector.shape_cast %21 : vector<1x1x4x288xf32> to vector<4x288xf32>
    %c28 = arith.constant 28 : index
    %c0_33 = arith.constant 0 : index
    %23 = vector.load %arg6[%c28, %c0_33] : memref<36x288xf32, #tpu.memory_space<vmem>>, vector<4x288xf32>
    tpu.vector_store %arg6[%c28, %c0_33], %22 {strides = array<i32>} : memref<36x288xf32, #tpu.memory_space<vmem>>, vector<4x288xf32>,
    %c0_34 = arith.constant 0 : index
    %c0_35 = arith.constant 0 : index
    %c0_36 = arith.constant 0 : index
    %c38 = arith.constant 38 : index
    %24 = vector.load %arg2[%c0_34, %c0_35, %c0_36, %c38] : memref<1x1x4x342xf32, #tpu.memory_space<vmem>>, vector<1x1x4x288xf32>
    %25 = vector.shape_cast %24 : vector<1x1x4x288xf32> to vector<4x288xf32>
    %c32 = arith.constant 32 : index
    %c0_37 = arith.constant 0 : index
    %26 = vector.load %arg6[%c32, %c0_37] : memref<36x288xf32, #tpu.memory_space<vmem>>, vector<4x288xf32>
    tpu.vector_store %arg6[%c32, %c0_37], %25 {strides = array<i32>} : memref<36x288xf32, #tpu.memory_space<vmem>>, vector<4x288xf32>,
    %c0_38 = arith.constant 0 : index
    %c0_39 = arith.constant 0 : index
    %c0_40 = arith.constant 0 : index
    %27 = vector.load %arg3[%c0_38, %c0_39, %c0_40] : memref<1x8x36xf32, #tpu.memory_space<vmem>>, vector<1x8x36xf32>
    %28 = vector.shape_cast %27 : vector<1x8x36xf32> to vector<8x36xf32>
    %c0_41 = arith.constant 0 : index
    %c0_42 = arith.constant 0 : index
    %29 = vector.load %arg6[%c0_41, %c0_42] : memref<36x288xf32, #tpu.memory_space<vmem>>, vector<36x288xf32>
    %cst = arith.constant dense<0.000000e+00> : vector<8x288xf32>
    %30 = tpu.matmul %28, %29, %cst {dimension_numbers = #tpu.dot_dimension_numbers<[1], [0], [0], [1], [0, 0, 1, 1], [], []>} : vector<8x36xf32>, vector<36x288xf32>, vector<8x288xf32> -> vector<8x288xf32>
    %c0_43 = arith.constant 0 : index
    %c0_44 = arith.constant 0 : index
    %c0_45 = arith.constant 0 : index
    %31 = vector.load %arg4[%c0_43, %c0_44, %c0_45] : memref<1x8x2xf32, #tpu.memory_space<vmem>>, vector<1x8x1xf32>
    %32 = vector.shape_cast %31 : vector<1x8x1xf32> to vector<8x1xf32>
    %33 = vector.broadcast %32 : vector<8x1xf32> to vector<8x288xf32>
    %34 = arith.addf %30, %33 : vector<8x288xf32>
    %cst_46 = arith.constant 0.000000e+00 : f32
    %35 = vector.broadcast %cst_46 : f32 to vector<8x288xf32>
    %36 = arith.cmpf ogt, %34, %35 : vector<8x288xf32>
    %c0_47 = arith.constant 0 : index
    %c0_48 = arith.constant 0 : index
    %c1_49 = arith.constant 1 : index
    %37 = vector.load %arg4[%c0_47, %c0_48, %c1_49] : memref<1x8x2xf32, #tpu.memory_space<vmem>>, vector<1x8x1xf32>
    %38 = vector.shape_cast %37 : vector<1x8x1xf32> to vector<8x1xf32>
    %39 = vector.broadcast %38 : vector<8x1xf32> to vector<8x288xf32>
    %40 = arith.mulf %39, %34 : vector<8x288xf32>
    %41 = arith.select %36, %34, %40 : vector<8x288xi1>, vector<8x288xf32>
    %c0_50 = arith.constant 0 : index
    %c0_51 = arith.constant 0 : index
    %c0_52 = arith.constant 0 : index
    %c0_53 = arith.constant 0 : index
    %42 = vector.load %arg5[%c0_50, %c0_51, %c0_52, %c0_53] : memref<1x1x8x288xf32, #tpu.memory_space<vmem>>, vector<1x1x8x288xf32>
    %43 = vector.shape_cast %42 : vector<1x1x8x288xf32> to vector<8x288xf32>
    %44 = vector.shape_cast %41 : vector<8x288xf32> to vector<1x1x8x288xf32>
    tpu.vector_store %arg5[%c0_50, %c0_51, %c0_52, %c0_53], %44 {strides = array<i32>} : memref<1x1x8x288xf32, #tpu.memory_space<vmem>>, vector<1x1x8x288xf32>,
    return
  }
  func.func @transform_0(%arg0: i32, %arg1: i32) -> (i32, i32, i32, i32) {
    %c0_i32 = arith.constant 0 : i32
    %c0_i32_0 = arith.constant 0 : i32
    %c0_i32_1 = arith.constant 0 : i32
    return %arg1, %arg0, %c0_i32, %c0_i32_0 : i32, i32, i32, i32
  }
  func.func @transform_1(%arg0: i32, %arg1: i32) -> (i32, i32, i32) {
    %c0_i32 = arith.constant 0 : i32
    %c0_i32_0 = arith.constant 0 : i32
    %c0_i32_1 = arith.constant 0 : i32
    return %arg0, %c0_i32, %c0_i32_0 : i32, i32, i32
  }
  func.func @transform_2(%arg0: i32, %arg1: i32) -> (i32, i32, i32) {
    %c0_i32 = arith.constant 0 : i32
    %c0_i32_0 = arith.constant 0 : i32
    %c0_i32_1 = arith.constant 0 : i32
    return %arg0, %c0_i32, %c0_i32_0 : i32, i32, i32
  }
  func.func @transform_3(%arg0: i32, %arg1: i32) -> (i32, i32, i32, i32) {
    %c0_i32 = arith.constant 0 : i32
    %c0_i32_0 = arith.constant 0 : i32
    %c0_i32_1 = arith.constant 0 : i32
    return %arg1, %arg0, %c0_i32, %c0_i32_0 : i32, i32, i32, i32
  }
}

</mosaic_0001>

<llo_original>
// kernel: conv_block_forward.1
$region0: #{conv_block_forward.1}
  #allocation0 [shape = 'u32[]', space=smem, size = 0x4, offset = 0x4, fixed_abs, tag = 'smem constant byte address 0x4 - core index']
  #allocation1 [shape = 'u32[144,128]{1,0:T(1,128)}', space=vmem, size = 0x12000, scoped, tag = 'internal scratch']
  #allocation2 [shape = 'f32[36,288]{1,0:T(8,128)}', space=vmem, size = 0xf000, scoped, tag = 'scratch operand']
  %s0 = inlined_call_operand.hbm [shape: f32[2,1,4,342], index: 0, kind: input, shape index: {}]
  %s1 = inlined_call_operand.hbm [shape: f32[1,8,36], index: 1, kind: input, shape index: {}]
  %s2 = inlined_call_operand.hbm [shape: f32[1,8,2], index: 2, kind: input, shape index: {}]
  %s3 = inlined_call_operand.hbm [shape: f32[2,1,8,288], index: 3, kind: output, shape index: {}]
  %s4 = sld [smem:[#allocation0]]
  $region57: #{conv_block_forward.1} parent=0
    _
  %s6 = ssub.s32 1, %s4
  %s7 = scalar_select 0, %s6, %s4
  $region1: #{conv_block_forward.1} parent=0
    #allocation3 [shape = 'u8[12288]{0}', space=vmem, size = 0x3000, scoped, tag = 'input window, operand 0']
    #allocation4 [shape = 's32[2]{0}', space=sflag, size = 0x8, scoped, tag = 'scoped memory for conv_block_forward.1']
    #allocation5 [shape = 's32[2]{0}', space=sflag, size = 0x8, scoped, tag = 'scoped memory for conv_block_forward.1']
    #allocation6 [shape = 'u8[4096]{0}', space=vmem, size = 0x1000, scoped, tag = 'input window, operand 1, single buffered']
    #allocation7 [shape = 's32[1]{0}', space=sflag, size = 0x4, scoped, tag = 'scoped memory for conv_block_forward.1']
    #allocation8 [shape = 'u8[4096]{0}', space=vmem, size = 0x1000, scoped, tag = 'input window, operand 2, single buffered']
    #allocation9 [shape = 'u8[24576]{0}', space=vmem, size = 0x6000, scoped, tag = 'output window, operand 0']
    %8 = vsyncpa [#allocation4], 0
    %s9 = scalar_lea.sflag [#allocation4], 1
    %10 = vsyncpa %s9, 0
    %11 = vsyncpa [#allocation7], 0
    %12 = vsyncpa [#allocation5], 0
    %s13 = scalar_lea.sflag [#allocation5], 1
    %14 = vsyncpa %s13, 0
    loop: start=0, step=1, limit=4
    $region2: #{conv_block_forward.1} parent=1 // loop_pre_header
      _
    $region3: #{conv_block_forward.1} parent=1 // loop_header
      %s16 = sphi 0, %s20
      %p17 = scmp.ge.s32.totalorder %s16, 4
      %s23 = sphi 0, %s35
      %s24 = sphi 0, %s31
      %s25 = sphi 0, %s23
      %s26 = sphi 0, %s24
      %s27 = sphi 0, %s25
      %s28 = sphi 0, %s26
      %s40 = sphi 0, %s42
      %s43 = sphi 0, %s40
      %s44 = sphi 0, %s43
      %s60 = sphi 0, %s44
      %s66 = sphi 0, %s68
      %s69 = sphi 0, %s66
      %s70 = sphi 0, %s69
      %s86 = sphi 0, %s70
      %s92 = sphi 0, %s94
      %s95 = sphi 0, %s92
      %s96 = sphi 0, %s95
      %s112 = sphi 0, %s96
      %s120 = sphi 0, %s122
      %s123 = sphi 0, %s120
      %s124 = sphi 0, %s123
      %s140 = sphi 0, %s124
    $region4: #{conv_block_forward.1} parent=1 // loop_header_branch
      %19 = sbr.rel (%p17) target = $region8
    $region5: #{conv_block_forward.1} parent=1 // loop_body
      %s21 = ssub.s32 %s16, 1
      %s22 = ssub.s32 %s16, 2
      %s29 = sadd.s32 1, %s24
      %p30 = scmp.ge.s32.totalorder %s29, 2
      %s31 = scalar_select %p30, 0, %s29
      %s32 = sadd.s32 1, %s23
      %s33 = scalar_select %p30, %s32, %s23
      %p34 = scmp.ge.s32.totalorder %s33, 1
      %s35 = scalar_select %p34, 0, %s33
      %s36 = ssub.s32 %s24, %s31
      %s37 = ssub.s32 %s23, %s35
      %s38 = sor.u32 %s36, %s37
      %p39 = scmp.eq.s32.totalorder %s38, 0
      %s41 = sadd.s32 %s40, 1
      %s42 = scalar_select %p39, %s40, %s41
      %p45 = pneg %p39
      %p46 = scmp.eq.s32.totalorder %s16, 1
      %p47 = por %p45, %p46
      %p48 = scmp.ne.s32.totalorder %s40, %s43
      %p49 = scmp.eq.s32.totalorder %s16, 0
      %p50 = por %p48, %p49
      %p51 = scmp.ne.s32.totalorder %s40, %s43
      %p52 = scmp.eq.s32.totalorder %s21, 1
      %p53 = por %p51, %p52
      %p54 = scmp.ne.s32.totalorder %s43, %s44
      %p55 = scmp.eq.s32.totalorder %s21, 0
      %p56 = por %p54, %p55
      %p57 = scmp.ne.s32.totalorder %s43, %s44
      %p58 = scmp.eq.s32.totalorder %s22, 1
      %p59 = por %p57, %p58
      %p61 = scmp.ne.s32.totalorder %s44, %s60
      %p62 = scmp.eq.s32.totalorder %s22, 0
      %p63 = por %p61, %p62
      %s64 = ssub.s32 %s23, %s35
      %p65 = scmp.eq.s32.totalorder %s64, 0
      %s67 = sadd.s32 %s66, 1
      %s68 = scalar_select %p65, %s66, %s67
      %p71 = pneg %p65
      %p72 = scmp.eq.s32.totalorder %s16, 1
      %p73 = por %p71, %p72
      %p74 = scmp.ne.s32.totalorder %s66, %s69
      %p75 = scmp.eq.s32.totalorder %s16, 0
      %p76 = por %p74, %p75
      %p77 = scmp.ne.s32.totalorder %s66, %s69
      %p78 = scmp.eq.s32.totalorder %s21, 1
      %p79 = por %p77, %p78
      %p80 = scmp.ne.s32.totalorder %s69, %s70
      %p81 = scmp.eq.s32.totalorder %s21, 0
      %p82 = por %p80, %p81
      %p83 = scmp.ne.s32.totalorder %s69, %s70
      %p84 = scmp.eq.s32.totalorder %s22, 1
      %p85 = por %p83, %p84
      %p87 = scmp.ne.s32.totalorder %s70, %s86
      %p88 = scmp.eq.s32.totalorder %s22, 0
      %p89 = por %p87, %p88
      %s90 = ssub.s32 %s23, %s35
      %p91 = scmp.eq.s32.totalorder %s90, 0
      %s93 = sadd.s32 %s92, 1
      %s94 = scalar_select %p91, %s92, %s93
      %p97 = pneg %p91
      %p98 = scmp.eq.s32.totalorder %s16, 1
      %p99 = por %p97, %p98
      %p100 = scmp.ne.s32.totalorder %s92, %s95
      %p101 = scmp.eq.s32.totalorder %s16, 0
      %p102 = por %p100, %p101
      %p103 = scmp.ne.s32.totalorder %s92, %s95
      %p104 = scmp.eq.s32.totalorder %s21, 1
      %p105 = por %p103, %p104
      %p106 = scmp.ne.s32.totalorder %s95, %s96
      %p107 = scmp.eq.s32.totalorder %s21, 0
      %p108 = por %p106, %p107
      %p109 = scmp.ne.s32.totalorder %s95, %s96
      %p110 = scmp.eq.s32.totalorder %s22, 1
      %p111 = por %p109, %p110
      %p113 = scmp.ne.s32.totalorder %s96, %s112
      %p114 = scmp.eq.s32.totalorder %s22, 0
      %p115 = por %p113, %p114
      %s116 = ssub.s32 %s24, %s31
      %s117 = ssub.s32 %s23, %s35
      %s118 = sor.u32 %s116, %s117
      %p119 = scmp.eq.s32.totalorder %s118, 0
      %s121 = sadd.s32 %s120, 1
      %s122 = scalar_select %p119, %s120, %s121
      %p125 = pneg %p119
      %p126 = scmp.eq.s32.totalorder %s16, 1
      %p127 = por %p125, %p126
      %p128 = scmp.ne.s32.totalorder %s120, %s123
      %p129 = scmp.eq.s32.totalorder %s16, 0
      %p130 = por %p128, %p129
      %p131 = scmp.ne.s32.totalorder %s120, %s123
      %p132 = scmp.eq.s32.totalorder %s21, 1
      %p133 = por %p131, %p132
      %p134 = scmp.ne.s32.totalorder %s123, %s124
      %p135 = scmp.eq.s32.totalorder %s21, 0
      %p136 = por %p134, %p135
      %p137 = scmp.ne.s32.totalorder %s123, %s124
      %p138 = scmp.eq.s32.totalorder %s22, 1
      %p139 = por %p137, %p138
      %p141 = scmp.ne.s32.totalorder %s124, %s140
      %p142 = scmp.eq.s32.totalorder %s22, 0
      %p143 = por %p141, %p142
      %p144 = scmp.le.s32.totalorder 1, %s16
      %p145 = scmp.lt.s32.totalorder %s16, 3
      %p146 = pnand %p144, %p145
      %p147 = pneg %p146
      // Predicated region
      $region9: #{conv_block_forward.1} parent=5 // pred_check
        _
      $region10: #{conv_block_forward.1} parent=5 // pred_check_branch
        %149 = sbr.rel (%p146) target = $region12
      $region11: #{conv_block_forward.1} parent=5 // pred_region
        %s150 = ssub.s32 %s16, 1
        // Predicated region
        $region13: #{conv_block_forward.1} parent=11 // pred_check
          %p151 = pneg %p82
        $region14: #{conv_block_forward.1} parent=11 // pred_check_branch
          %153 = sbr.rel (%p151) target = $region16
        $region15: #{conv_block_forward.1} parent=11 // pred_region
          %s155 = ssub.s32 128, 128
          %156 = vsyncadd [#allocation7], %s155
          %s157 = smul.addr %s25, 128
          %s158 = scalar_lea.hbm %s1, %s157
          %s160 = sshll.u32 [#allocation6], 4
          %s161 = int_to_ptr.vmem [resolvable:$true] %s160
          %163 = dma.hbm_to_vmem [thread:$0]  %s158, 128, %s161, [#allocation7]
        $region16: #{conv_block_forward.1} parent=11 // pred_fallthru
          _
        // Predicated region
        $region17: #{conv_block_forward.1} parent=11 // pred_check
          %p164 = pneg %p108
        $region18: #{conv_block_forward.1} parent=11 // pred_check_branch
          %166 = sbr.rel (%p164) target = $region20
        $region19: #{conv_block_forward.1} parent=11 // pred_region
          %s168 = ssub.s32 128, 128
          %169 = vsyncadd [#allocation7], %s168
          %s170 = smul.addr %s25, 128
          %s171 = scalar_lea.hbm %s2, %s170
          %s173 = sshll.u32 [#allocation8], 4
          %s174 = int_to_ptr.vmem [resolvable:$true] %s173
          %176 = dma.hbm_to_vmem [thread:$0]  %s171, 128, %s174, [#allocation7]
        $region20: #{conv_block_forward.1} parent=11 // pred_fallthru
          _
      $region12: #{conv_block_forward.1} parent=5 // pred_fallthru
        _
      %p177 = scmp.lt.s32.totalorder %s16, 2
      // Predicated region
      $region21: #{conv_block_forward.1} parent=5 // pred_check
        %p178 = pneg %p177
      $region22: #{conv_block_forward.1} parent=5 // pred_check_branch
        %180 = sbr.rel (%p178) target = $region24
      $region23: #{conv_block_forward.1} parent=5 // pred_region
        // Predicated region
        $region25: #{conv_block_forward.1} parent=23 // pred_check
          %p181 = pneg %p50
        $region26: #{conv_block_forward.1} parent=23 // pred_check_branch
          %183 = sbr.rel (%p181) target = $region28
        $region27: #{conv_block_forward.1} parent=23 // pred_region
          %s184 = sand.u32 %s40, 1
          %s185 = scalar_lea.sflag [#allocation4], %s184
          %s186 = sand.u32 %s40, 1
          %s187 = smul.addr %s186, 12
          %s188 = scalar_lea.vmem [#allocation3], %s187
          %s190 = ssub.s32 192, 192
          %191 = vsyncadd %s185, %s190
          %s192 = smul.addr %s23, 3
          %s193 = smul.addr %s24, 3
          %s194 = sadd.s32 %s192, %s193
          %s195 = smul.addr %s194, 64
          %s196 = scalar_lea.hbm %s0, %s195
          %s198 = sshll.u32 %s188, 4
          %s199 = int_to_ptr.vmem [resolvable:$true] %s198
          %201 = dma.hbm_to_vmem [thread:$0]  %s196, 192, %s199, %s185
        $region28: #{conv_block_forward.1} parent=23 // pred_fallthru
          _
      $region24: #{conv_block_forward.1} parent=5 // pred_fallthru
        _
      %p202 = scmp.le.s32.totalorder 1, %s16
      %p203 = scmp.lt.s32.totalorder %s16, 3
      %p204 = pnand %p202, %p203
      %p205 = pneg %p204
      // Predicated region
      $region29: #{conv_block_forward.1} parent=5 // pred_check
        _
      $region30: #{conv_block_forward.1} parent=5 // pred_check_branch
        %207 = sbr.rel (%p204) target = $region32
      $region31: #{conv_block_forward.1} parent=5 // pred_region
        %s208 = ssub.s32 %s16, 1
        %s209 = sand.u32 %s43, 1
        %s210 = scalar_lea.sflag [#allocation4], %s209
        %s211 = sand.u32 %s43, 1
        %s212 = smul.addr %s211, 12
        %s213 = scalar_lea.vmem [#allocation3], %s212
        // Predicated region
        $region33: #{conv_block_forward.1} parent=31 // pred_check
          %p214 = pneg %p56
        $region34: #{conv_block_forward.1} parent=31 // pred_check_branch
          %216 = sbr.rel (%p214) target = $region36
        $region35: #{conv_block_forward.1} parent=31 // pred_region
          %217 = dma.done %s210, 192
        $region36: #{conv_block_forward.1} parent=31 // pred_fallthru
          _
        // Predicated region
        $region37: #{conv_block_forward.1} parent=31 // pred_check
          %p218 = pneg %p82
        $region38: #{conv_block_forward.1} parent=31 // pred_check_branch
          %220 = sbr.rel (%p218) target = $region40
        $region39: #{conv_block_forward.1} parent=31 // pred_region
          %221 = dma.done [#allocation7], 128
        $region40: #{conv_block_forward.1} parent=31 // pred_fallthru
          _
        // Predicated region
        $region41: #{conv_block_forward.1} parent=31 // pred_check
          %p222 = pneg %p108
        $region42: #{conv_block_forward.1} parent=31 // pred_check_branch
          %224 = sbr.rel (%p222) target = $region44
        $region43: #{conv_block_forward.1} parent=31 // pred_region
          %225 = dma.done [#allocation7], 128
        $region44: #{conv_block_forward.1} parent=31 // pred_fallthru
          _
        %s226 = sand.u32 %s43, 1
        %s227 = scalar_lea.sflag [#allocation4], %s226
        %s228 = sand.u32 %s43, 1
        %s229 = smul.addr %s228, 12
        %s230 = scalar_lea.vmem [#allocation3], %s229
        %p231 = pneg %p56
        %p232 = pneg %p53
        %p233 = pneg %p82
        %p234 = pneg %p79
        %p235 = pneg %p108
        %p236 = pneg %p105
        %p237 = pneg %p136
        %p238 = pneg %p133
        %s239 = sand.u32 %s123, 1
        %s240 = scalar_lea.sflag [#allocation5], %s239
        %s241 = sand.u32 %s123, 1
        %s242 = smul.addr %s241, 24
        %s243 = scalar_lea.vmem [#allocation9], %s242
        %v244 = vld [vmem:[%s213] sm:$0xff]
        %v245 = vld [vmem:[%s213 + $0x8] sm:$0xf]
        %v247 = vcombine.high %v244, %v244
        %249 = vst [vmem:[#allocation2] sm:$0xf] %v244
        %250 = vst [vmem:[#allocation2 + $0x8] sm:$0xf] %v247
        %vm251 = vcmask 257024
        %252 = vst.msk [vmem:[#allocation2 + $0x10] sm:$0xf] %vm251, %v245
        %v253 = vld [vmem:[%s213] sm:$0xff]
        %v254 = vld [vmem:[%s213 + $0x8] sm:$0xf]
        %v257 = vcombine.low %v253, %v253
        %v258 = vcombine.low %v254, %v254
        %259 = vrot.lane.b32.xlu0 %v257, 127
        %v260 = vpop.permute.xlu0 %259
        %261 = vrot.lane.b32.xlu0 %v253, 127
        %v262 = vpop.permute.xlu0 %261
        %263 = vrot.lane.b32.xlu0 %v258, 127
        %v264 = vpop.permute.xlu0 %263
        %vm265 = vcmask 1039360
        %v266 = vsel %vm265, %v260, %v262
        %v267 = vsel %vm265, %v262, %v264
        %271 = vst [vmem:[#allocation2] sm:$0xf0] %v266
        %272 = vst [vmem:[#allocation2 + $0x8] sm:$0xf0] %v267
        %vm273 = vcmask 261124
        %274 = vst.msk [vmem:[#allocation2 + $0x10] sm:$0xf0] %vm273, %v264
        %v275 = vld [vmem:[%s213] sm:$0xff]
        %v276 = vld [vmem:[%s213 + $0x8] sm:$0xf]
        %v279 = vcombine.high %v275, %v275
        %280 = vrot.lane.b32.xlu0 %v275, 126
        %v281 = vpop.permute.xlu0 %280
        %282 = vrot.lane.b32.xlu0 %v279, 126
        %v283 = vpop.permute.xlu0 %282
        %284 = vrot.lane.b32.xlu0 %v276, 126
        %v285 = vpop.permute.xlu0 %284
        %vm286 = vcmask 1031168
        %v287 = vsel %vm286, %v281, %v283
        %v288 = vsel %vm286, %v283, %v285
        %292 = vst [vmem:[#allocation2 + $0x18] sm:$0xf] %v287
        %293 = vst [vmem:[#allocation2 + $0x20] sm:$0xf] %v288
        %294 = vst.msk [vmem:[#allocation2 + $0x28] sm:$0xf] %vm251, %v285
        %v295 = vld [vmem:[%s213] sm:$0xff]
        %v296 = vld [vmem:[%s213 + $0x8] sm:$0xf]
        %v299 = vcombine.low %v295, %v295
        %v300 = vcombine.low %v296, %v296
        %301 = vrot.lane.b32.xlu0 %v299, 110
        %v302 = vpop.permute.xlu0 %301
        %303 = vrot.lane.b32.xlu0 %v295, 110
        %v304 = vpop.permute.xlu0 %303
        %305 = vrot.lane.b32.xlu0 %v300, 110
        %v306 = vpop.permute.xlu0 %305
        %vm307 = vcmask 900096
        %v308 = vsel %vm307, %v302, %v304
        %v309 = vsel %vm307, %v304, %v306
        %313 = vst [vmem:[#allocation2 + $0x18] sm:$0xf0] %v308
        %314 = vst [vmem:[#allocation2 + $0x20] sm:$0xf0] %v309
        %315 = vst.msk [vmem:[#allocation2 + $0x28] sm:$0xf0] %vm273, %v306
        %v316 = vld [vmem:[%s213] sm:$0xff]
        %v317 = vld [vmem:[%s213 + $0x8] sm:$0xf]
        %v320 = vcombine.high %v316, %v316
        %321 = vrot.lane.b32.xlu0 %v316, 109
        %v322 = vpop.permute.xlu0 %321
        %323 = vrot.lane.b32.xlu0 %v320, 109
        %v324 = vpop.permute.xlu0 %323
        %325 = vrot.lane.b32.xlu0 %v317, 109
        %v326 = vpop.permute.xlu0 %325
        %vm327 = vcmask 891904
        %v328 = vsel %vm327, %v322, %v324
        %v329 = vsel %vm327, %v324, %v326
        %333 = vst [vmem:[#allocation2 + $0x30] sm:$0xf] %v328
        %334 = vst [vmem:[#allocation2 + $0x38] sm:$0xf] %v329
        %335 = vst.msk [vmem:[#allocation2 + $0x40] sm:$0xf] %vm251, %v326
        %v336 = vld [vmem:[%s213] sm:$0xff]
        %v337 = vld [vmem:[%s213 + $0x8] sm:$0xf]
        %v340 = vcombine.low %v336, %v336
        %v341 = vcombine.low %v337, %v337
        %342 = vrot.lane.b32.xlu0 %v340, 108
        %v343 = vpop.permute.xlu0 %342
        %344 = vrot.lane.b32.xlu0 %v336, 108
        %v345 = vpop.permute.xlu0 %344
        %346 = vrot.lane.b32.xlu0 %v341, 108
        %v347 = vpop.permute.xlu0 %346
        %vm348 = vcmask 883712
        %v349 = vsel %vm348, %v343, %v345
        %v350 = vsel %vm348, %v345, %v347
        %354 = vst [vmem:[#allocation2 + $0x30] sm:$0xf0] %v349
        %355 = vst [vmem:[#allocation2 + $0x38] sm:$0xf0] %v350
        %356 = vst.msk [vmem:[#allocation2 + $0x40] sm:$0xf0] %vm273, %v347
        %v357 = vld [vmem:[%s213] sm:$0xff]
        %v358 = vld [vmem:[%s213 + $0x8] sm:$0xf]
        %v361 = vcombine.high %v357, %v357
        %362 = vrot.lane.b32.xlu0 %v357, 92
        %v363 = vpop.permute.xlu0 %362
        %364 = vrot.lane.b32.xlu0 %v361, 92
        %v365 = vpop.permute.xlu0 %364
        %366 = vrot.lane.b32.xlu0 %v358, 92
        %v367 = vpop.permute.xlu0 %366
        %vm368 = vcmask 752640
        %v369 = vsel %vm368, %v363, %v365
        %v370 = vsel %vm368, %v365, %v367
        %374 = vst [vmem:[#allocation2 + $0x48] sm:$0xf] %v369
        %375 = vst [vmem:[#allocation2 + $0x50] sm:$0xf] %v370
        %376 = vst.msk [vmem:[#allocation2 + $0x58] sm:$0xf] %vm251, %v367
        %v377 = vld [vmem:[%s213] sm:$0xff]
        %v378 = vld [vmem:[%s213 + $0x8] sm:$0xf]
        %v381 = vcombine.low %v377, %v377
        %v382 = vcombine.low %v378, %v378
        %383 = vrot.lane.b32.xlu0 %v381, 91
        %v384 = vpop.permute.xlu0 %383
        %385 = vrot.lane.b32.xlu0 %v377, 91
        %v386 = vpop.permute.xlu0 %385
        %387 = vrot.lane.b32.xlu0 %v382, 91
        %v388 = vpop.permute.xlu0 %387
        %vm389 = vcmask 744448
        %v390 = vsel %vm389, %v384, %v386
        %v391 = vsel %vm389, %v386, %v388
        %395 = vst [vmem:[#allocation2 + $0x48] sm:$0xf0] %v390
        %396 = vst [vmem:[#allocation2 + $0x50] sm:$0xf0] %v391
        %397 = vst.msk [vmem:[#allocation2 + $0x58] sm:$0xf0] %vm273, %v388
        %v398 = vld [vmem:[%s213] sm:$0xff]
        %v399 = vld [vmem:[%s213 + $0x8] sm:$0xf]
        %v402 = vcombine.high %v398, %v398
        %403 = vrot.lane.b32.xlu0 %v398, 90
        %v404 = vpop.permute.xlu0 %403
        %405 = vrot.lane.b32.xlu0 %v402, 90
        %v406 = vpop.permute.xlu0 %405
        %407 = vrot.lane.b32.xlu0 %v399, 90
        %v408 = vpop.permute.xlu0 %407
        %vm409 = vcmask 736256
        %v410 = vsel %vm409, %v404, %v406
        %v411 = vsel %vm409, %v406, %v408
        %415 = vst [vmem:[#allocation2 + $0x60] sm:$0xf] %v410
        %416 = vst [vmem:[#allocation2 + $0x68] sm:$0xf] %v411
        %417 = vst.msk [vmem:[#allocation2 + $0x70] sm:$0xf] %vm251, %v408
        %v418 = vld [vmem:[#allocation6] sm:$0xff]
        %v419 = vld [vmem:[#allocation2] sm:$0xff]
        %v420 = vld [vmem:[#allocation2 + $0x8] sm:$0xff]
        %v421 = vld [vmem:[#allocation2 + $0x10] sm:$0xff]
        %v422 = vld [vmem:[#allocation2 + $0x18] sm:$0xff]
        %v423 = vld [vmem:[#allocation2 + $0x20] sm:$0xff]
        %v424 = vld [vmem:[#allocation2 + $0x28] sm:$0xff]
        %v425 = vld [vmem:[#allocation2 + $0x30] sm:$0xff]
        %v426 = vld [vmem:[#allocation2 + $0x38] sm:$0xff]
        %v427 = vld [vmem:[#allocation2 + $0x40] sm:$0xff]
        %v428 = vld [vmem:[#allocation2 + $0x48] sm:$0xff]
        %v429 = vld [vmem:[#allocation2 + $0x50] sm:$0xff]
        %v430 = vld [vmem:[#allocation2 + $0x58] sm:$0xff]
        %v431 = vld [vmem:[#allocation2 + $0x60] sm:$0xf]
        %v432 = vld [vmem:[#allocation2 + $0x68] sm:$0xf]
        %v433 = vld [vmem:[#allocation2 + $0x70] sm:$0xf]
        %v434 = vld [vmem:[#allocation8] sm:$0xff]
        %436 = vset.pattern.permute.xlu0 0
        %437 = vperm.xlu0 %436, %v434
        %v438 = vpop.permute.xlu0 %437
        %vm440 = vcmask 293888
        %v442 = vsel %vm440, %v418, 0
        %vm444 = vcmask 1043456
        %v446 = vsel %vm444, %v431, 0
        %v449 = vsel %vm444, %v432, 0
        %v452 = vsel %vm444, %v433, 0
        %454 = vmatprep.subr.mxu0 %v420
        %455 = vmatpush1.msra.mxu0 %v419
        %456 = vmatprep.subr.mxu0 %v423
        %457 = vmatpush1.msra.mxu0 %v422
        %458 = vmatprep.subr.mxu0 %v426
        %459 = vmatpush1.msra.mxu0 %v425
        %460 = vmatprep.subr.mxu0 %v429
        %461 = vmatpush1.msra.mxu0 %v428
        %462 = vmatprep.subr.mxu0 %v449
        %463 = vmatpush1.msra.mxu0 %v446
        %464 = vmatprep.subr.mxu0 0.0
        %465 = vmatpush1.msra.mxu0 0.0
        %466 = vmatprep.subr.mxu0 0.0
        %467 = vmatpush1.msra.mxu0 0.0
        %468 = vmatprep.subr.mxu0 0.0
        %469 = vmatpush1.msra.mxu0 0.0
        %470 = vmatprep.subr.mxu0 0.0
        %471 = vmatpush1.msra.mxu0 0.0
        %472 = vmatprep.subr.mxu0 0.0
        %473 = vmatpush1.msra.mxu0 0.0
        %474 = vmatprep.subr.mxu0 0.0
        %475 = vmatpush1.msra.mxu0 0.0
        %476 = vmatprep.subr.mxu0 0.0
        %477 = vmatpush1.msra.mxu0 0.0
        %478 = vmatprep.subr.mxu0 0.0
        %479 = vmatpush1.msra.mxu0 0.0
        %480 = vmatprep.subr.mxu0 0.0
        %481 = vmatpush1.msra.mxu0 0.0
        %482 = vmatprep.subr.mxu0 0.0
        %483 = vmatpush1.msra.mxu0 0.0
        %484 = vmatprep.subr.mxu0 0.0
        %485 = vmatpush1.msra.mxu0 0.0
        %486 = vmatprep.subr.mxu0 0.0
        %487 = vmatpush1.msra.mxu0 0.0
        %488 = vmatprep.subr.mxu0 0.0
        %489 = vmatpush1.msra.mxu0 0.0
        %490 = vmatprep.subr.mxu0 0.0
        %491 = vmatpush1.msra.mxu0 0.0
        %492 = vmatprep.subr.mxu0 0.0
        %493 = vmatpush1.msra.mxu0 0.0
        %494 = vmatprep.subr.mxu0 0.0
        %495 = vmatpush1.msra.mxu0 0.0
        %496 = vmatprep.subr.mxu0 0.0
        %497 = vmatpush1.msra.mxu0 0.0
        %498 = vmatprep.subr.mxu0 0.0
        %499 = vmatpush1.msra.mxu0 0.0
        %500 = vmatprep.subr.mxu0 0.0
        %501 = vmatpush1.msra.mxu0 0.0
        %502 = vmatprep.subr.mxu0 0.0
        %503 = vmatpush1.msra.mxu0 0.0
        %504 = vmatprep.subr.mxu0 0.0
        %505 = vmatpush1.msra.mxu0 0.0
        %506 = vmatprep.subr.mxu0 0.0
        %507 = vmatpush1.msra.mxu0 0.0
        %508 = vmatprep.subr.mxu0 0.0
        %509 = vmatpush1.msra.mxu0 0.0
        %510 = vmatprep.subr.mxu0 0.0
        %511 = vmatpush1.msra.mxu0 0.0
        %512 = vmatprep.subr.mxu0 0.0
        %513 = vmatpush1.msra.mxu0 0.0
        %514 = vmatprep.subr.mxu0 0.0
        %515 = vmatpush1.msra.mxu0 0.0
        %516 = vmatprep.subr.mxu0 0.0
        %517 = vmatpush1.msra.mxu0 0.0
        %518 = vmatprep.mubr.f32.mxu0 0.0
        %519 = vmatmul.mubr.f32.gmra.mrb[0].mxu0 %v442
        %v520 = vpop.f32.mrb[0].mxu0
        %v521 = vadd.f32 %v438, %v520
        %v522 = vpop.f32.mrb[0].mxu0
        %v523 = vadd.f32 %v438, %v522
        %524 = vdwg.mxu0
        %525 = vmatprep.subr.mxu0 0.0
        %526 = vmatpush1.msra.mxu0 %v421
        %527 = vmatprep.subr.mxu0 0.0
        %528 = vmatpush1.msra.mxu0 %v424
        %529 = vmatprep.subr.mxu0 0.0
        %530 = vmatpush1.msra.mxu0 %v427
        %531 = vmatprep.subr.mxu0 0.0
        %532 = vmatpush1.msra.mxu0 %v430
        %533 = vmatprep.subr.mxu0 0.0
        %534 = vmatpush1.msra.mxu0 %v452
        %535 = vmatprep.subr.mxu0 0.0
        %536 = vmatpush1.msra.mxu0 0.0
        %537 = vmatprep.subr.mxu0 0.0
        %538 = vmatpush1.msra.mxu0 0.0
        %539 = vmatprep.subr.mxu0 0.0
        %540 = vmatpush1.msra.mxu0 0.0
        %541 = vmatprep.subr.mxu0 0.0
        %542 = vmatpush1.msra.mxu0 0.0
        %543 = vmatprep.subr.mxu0 0.0
        %544 = vmatpush1.msra.mxu0 0.0
        %545 = vmatprep.subr.mxu0 0.0
        %546 = vmatpush1.msra.mxu0 0.0
        %547 = vmatprep.subr.mxu0 0.0
        %548 = vmatpush1.msra.mxu0 0.0
        %549 = vmatprep.subr.mxu0 0.0
        %550 = vmatpush1.msra.mxu0 0.0
        %551 = vmatprep.subr.mxu0 0.0
        %552 = vmatpush1.msra.mxu0 0.0
        %553 = vmatprep.subr.mxu0 0.0
        %554 = vmatpush1.msra.mxu0 0.0
        %555 = vmatprep.subr.mxu0 0.0
        %556 = vmatpush1.msra.mxu0 0.0
        %557 = vmatprep.subr.mxu0 0.0
        %558 = vmatpush1.msra.mxu0 0.0
        %559 = vmatprep.subr.mxu0 0.0
        %560 = vmatpush1.msra.mxu0 0.0
        %561 = vmatprep.subr.mxu0 0.0
        %562 = vmatpush1.msra.mxu0 0.0
        %563 = vmatprep.subr.mxu0 0.0
        %564 = vmatpush1.msra.mxu0 0.0
        %565 = vmatprep.subr.mxu0 0.0
        %566 = vmatpush1.msra.mxu0 0.0
        %567 = vmatprep.subr.mxu0 0.0
        %568 = vmatpush1.msra.mxu0 0.0
        %569 = vmatprep.subr.mxu0 0.0
        %570 = vmatpush1.msra.mxu0 0.0
        %571 = vmatprep.subr.mxu0 0.0
        %572 = vmatpush1.msra.mxu0 0.0
        %573 = vmatprep.subr.mxu0 0.0
        %574 = vmatpush1.msra.mxu0 0.0
        %575 = vmatprep.subr.mxu0 0.0
        %576 = vmatpush1.msra.mxu0 0.0
        %577 = vmatprep.subr.mxu0 0.0
        %578 = vmatpush1.msra.mxu0 0.0
        %579 = vmatprep.subr.mxu0 0.0
        %580 = vmatpush1.msra.mxu0 0.0
        %581 = vmatprep.subr.mxu0 0.0
        %582 = vmatpush1.msra.mxu0 0.0
        %583 = vmatprep.subr.mxu0 0.0
        %584 = vmatpush1.msra.mxu0 0.0
        %585 = vmatprep.subr.mxu0 0.0
        %586 = vmatpush1.msra.mxu0 0.0
        %587 = vmatprep.subr.mxu0 0.0
        %588 = vmatpush1.msra.mxu0 0.0
        %589 = vmatprep.mubr.f32.mxu0 0.0
        %590 = vmatmul.mubr.f32.gmra.mrb[0].mxu0 %v442
        %v591 = vpop.f32.mrb[0].mxu0
        %v592 = vadd.f32 %v438, %v591
        %v593 = vpop.f32.mrb[0].mxu0
        %594 = vdwg.mxu0
        %vm595 = vcmp.gt.f32.partialorder %v521, 0.0
        %vm596 = vcmp.gt.f32.partialorder %v523, 0.0
        %vm597 = vcmp.gt.f32.partialorder %v592, 0.0
        %598 = vset.pattern.permute.xlu0 1
        %599 = vperm.xlu0 %598, %v434
        %v600 = vpop.permute.xlu0 %599
        %v602 = vmul.f32 %v600, %v521
        %v603 = vmul.f32 %v600, %v523
        %v604 = vmul.f32 %v600, %v592
        %v605 = vsel %vm595, %v521, %v602
        %v606 = vsel %vm596, %v523, %v603
        %v607 = vsel %vm597, %v592, %v604
        %608 = vst [vmem:[%s243] sm:$0xff] %v605
        %609 = vst [vmem:[%s243 + $0x8] sm:$0xff] %v606
        %vm610 = vcmask 261120
        %611 = vst.msk [vmem:[%s243 + $0x10] sm:$0xff] %vm610, %v607
        %s612 = sand.u32 %s123, 1
        %s613 = scalar_lea.sflag [#allocation5], %s612
        %s614 = sand.u32 %s123, 1
        %s615 = smul.addr %s614, 24
        %s616 = scalar_lea.vmem [#allocation9], %s615
        // Predicated region
        $region45: #{conv_block_forward.1} parent=31 // pred_check
          %p617 = pneg %p133
        $region46: #{conv_block_forward.1} parent=31 // pred_check_branch
          %619 = sbr.rel (%p617) target = $region48
        $region47: #{conv_block_forward.1} parent=31 // pred_region
          %s621 = ssub.s32 384, 384
          %622 = vsyncadd %s613, %s621
          %s623 = smul.addr %s25, 3
          %s624 = smul.addr %s26, 3
          %s625 = sadd.s32 %s623, %s624
          %s626 = smul.addr %s625, 128
          %s627 = scalar_lea.hbm %s3, %s626
          %s629 = sshll.u32 %s616, 4
          %s630 = int_to_ptr.vmem [resolvable:$true] %s629
          %632 = dma.vmem_to_hbm [thread:$0]  %s630, 384, %s627, %s613
        $region48: #{conv_block_forward.1} parent=31 // pred_fallthru
          _
      $region32: #{conv_block_forward.1} parent=5 // pred_fallthru
        _
      %p633 = scmp.le.s32.totalorder 2, %s16
      // Predicated region
      $region49: #{conv_block_forward.1} parent=5 // pred_check
        %p634 = pneg %p633
      $region50: #{conv_block_forward.1} parent=5 // pred_check_branch
        %636 = sbr.rel (%p634) target = $region52
      $region51: #{conv_block_forward.1} parent=5 // pred_region
        %s637 = ssub.s32 %s16, 2
        // Predicated region
        $region53: #{conv_block_forward.1} parent=51 // pred_check
          %p638 = pneg %p139
        $region54: #{conv_block_forward.1} parent=51 // pred_check_branch
          %640 = sbr.rel (%p638) target = $region56
        $region55: #{conv_block_forward.1} parent=51 // pred_region
          %s641 = sand.u32 %s124, 1
          %s642 = scalar_lea.sflag [#allocation5], %s641
          %s643 = sand.u32 %s124, 1
          %s644 = smul.addr %s643, 24
          %s645 = scalar_lea.vmem [#allocation9], %s644
          %646 = dma.done %s642, 384
        $region56: #{conv_block_forward.1} parent=51 // pred_fallthru
          _
      $region52: #{conv_block_forward.1} parent=5 // pred_fallthru
        _
    $region6: #{conv_block_forward.1} parent=1 // loop_footer
      %s20 = sadd.s32 1, %s16
    $region7: #{conv_block_forward.1} parent=1 // loop_footer_branch
      %15 = sbr.rel target = $region3
    $region8: #{conv_block_forward.1} parent=1 // loop_exit
      _
    %647 = vsyncpa [#allocation4], 1
    %s648 = scalar_lea.sflag [#allocation4], 1
    %649 = vsyncpa %s648, 1
    %650 = vsyncpa [#allocation7], 1
    %651 = vsyncpa [#allocation5], 1
    %s652 = scalar_lea.sflag [#allocation5], 1
    %653 = vsyncpa %s652, 1

</llo_original>
